<compile_context>
chip_gen: v5e
topology: v5e:2x2
jax: 0.10.0
libtpu: 0.0.40
codegen_flags: <defaults>
</compile_context>

<pallas_src>
from functools import partial

import jax
import jax.numpy as jnp
from jax.experimental import pallas as pl
from jax.experimental.pallas import tpu as pltpu

HIDDEN = 64        # fc1/fc2 width (fixed by the PyTorch module)
_TB_MAX = 512      # max batch-tile rows
_TN_MAX = 2048     # max output-feature tile (lanes) -> 1-D grid for output_count <= 2048


def _round_up(n, m):
    return ((n + m - 1) // m) * m


def _cdiv(a, b):
    return -(-a // b)


def _globalnet_mlp_kernel(x_ref, w1_ref, b1_ref, w2_ref, b2_ref, w3_ref, b3_ref, q_ref):
    """Fused 3-layer MLP on one (batch-tile, N-tile): relu(x@W1+b1) -> relu(@W2+b2) -> @W3+b3."""
    x = x_ref[...].astype(jnp.bfloat16)                              # in-kernel f32->bf16 cast
    h1 = jnp.dot(x, w1_ref[...], preferred_element_type=jnp.float32) + b1_ref[...]
    h1 = jnp.maximum(h1, 0.0).astype(jnp.bfloat16)                   # f32 bias/ReLU, bf16 MXU operand
    h2 = jnp.dot(h1, w2_ref[...], preferred_element_type=jnp.float32) + b2_ref[...]
    h2 = jnp.maximum(h2, 0.0).astype(jnp.bfloat16)
    q = jnp.dot(h2, w3_ref[...], preferred_element_type=jnp.float32) + b3_ref[...]
    q_ref[...] = q.astype(q_ref.dtype)


def pack_globalnet_params(w1, b1, w2, b2, w3, b3):
    """One-time weight prep (bf16 casts + lane-dense N padding), hoisted out of the hot path.

    Weights are expected as [in, out] (i.e. already transposed vs. PyTorch's nn.Linear).
    """
    n = w3.shape[1]
    np_ = max(128, _round_up(n, 128))
    tn = min(_TN_MAX, np_)
    np_ = _round_up(np_, tn)

    w1_p = w1.astype(jnp.bfloat16)                                   # [k, 64], K left unpadded
    w2_p = w2.astype(jnp.bfloat16)                                   # [64, 64]
    w3_p = jnp.zeros((HIDDEN, np_), jnp.bfloat16).at[:, :n].set(w3.astype(jnp.bfloat16))
    b1_p = b1.reshape(1, -1).astype(jnp.float32)
    b2_p = b2.reshape(1, -1).astype(jnp.float32)
    b3_p = jnp.zeros((1, np_), jnp.float32).at[:, :n].set(
        b3.reshape(1, -1).astype(jnp.float32))
    return w1_p, b1_p, w2_p, b2_p, w3_p, b3_p


@partial(jax.jit, static_argnames=("n_out",))
def globalnet_forward(x, w1_p, b1_p, w2_p, b2_p, w3_p, b3_p, *, n_out):
    """x: [B, input_count] f32 (unpadded); packed params from pack_globalnet_params."""
    batch, k = x.shape
    np_ = w3_p.shape[1]
    tn = min(_TN_MAX, np_)

    # Adaptive batch tile: pad at most a few rows instead of up to a full _TB_MAX tile.
    n_tiles = _cdiv(batch, _TB_MAX)
    tb = _round_up(_cdiv(batch, n_tiles), 8)
    bp = tb * _cdiv(batch, tb)
    x_p = x if bp == batch else jnp.pad(x, ((0, bp - batch), (0, 0)))

    grid = (bp // tb, np_ // tn)

    q_p = pl.pallas_call(
        _globalnet_mlp_kernel,
        out_shape=jax.ShapeDtypeStruct((bp, np_), jnp.float32),
        grid_spec=pltpu.PrefetchScalarGridSpec(
            num_scalar_prefetch=0,
            grid=grid,
            in_specs=[
                pl.BlockSpec((tb, k), lambda i, j: (i, 0)),           # x: stream over batch (full K)
                pl.BlockSpec((k, HIDDEN), lambda i, j: (0, 0)),       # W1: resident
                pl.BlockSpec((1, HIDDEN), lambda i, j: (0, 0)),       # b1: resident
                pl.BlockSpec((HIDDEN, HIDDEN), lambda i, j: (0, 0)),  # W2: resident
                pl.BlockSpec((1, HIDDEN), lambda i, j: (0, 0)),       # b2: resident
                pl.BlockSpec((HIDDEN, tn), lambda i, j: (0, j)),      # W3: tiled over N (usually 1 tile)
                pl.BlockSpec((1, tn), lambda i, j: (0, j)),           # b3: tiled over N
            ],
            out_specs=pl.BlockSpec((tb, tn), lambda i, j: (i, j)),
        ),
        compiler_params=pltpu.CompilerParams(
            # Megacore (v7x) shards the batch axis only; sharding N would duplicate fc1/fc2 work.
            dimension_semantics=("parallel", "arbitrary")),
    )(x_p, w1_p, b1_p, w2_p, b2_p, w3_p, b3_p)

    return q_p[:batch, :n_out]


def init_globalnet_params(key, input_count, output_count, hidden=HIDDEN):
    """Init mimicking nn.Linear's U(-1/sqrt(fan_in), 1/sqrt(fan_in)); weights stored as [in, out]."""
    def linear_init(k, fan_in, fan_out):
        kw, kb = jax.random.split(k)
        bound = 1.0 / jnp.sqrt(fan_in)
        w = jax.random.uniform(kw, (fan_in, fan_out), jnp.float32, -bound, bound)
        b = jax.random.uniform(kb, (fan_out,), jnp.float32, -bound, bound)
        return w, b

    k1, k2, k3 = jax.random.split(key, 3)
    w1, b1 = linear_init(k1, input_count, hidden)
    w2, b2 = linear_init(k2, hidden, hidden)
    w3, b3 = linear_init(k3, hidden, output_count)
    return w1, b1, w2, b2, w3, b3


def reference_forward_bf16(x, w1, b1, w2, b2, w3, b3):
    """Reference with the same bf16-stream / f32-accumulate numerics as the kernel."""
    xb = x.astype(jnp.bfloat16)
    w1b, w2b, w3b = (w.astype(jnp.bfloat16) for w in (w1, w2, w3))
    y1 = jnp.maximum(
        jnp.dot(xb, w1b, preferred_element_type=jnp.float32) + b1.reshape(1, -1), 0.0
    ).astype(jnp.bfloat16)
    y2 = jnp.maximum(
        jnp.dot(y1, w2b, preferred_element_type=jnp.float32) + b2.reshape(1, -1), 0.0
    ).astype(jnp.bfloat16)
    return jnp.dot(y2, w3b, preferred_element_type=jnp.float32) + b3.reshape(1, -1)


def reference_forward_f32(x, w1, b1, w2, b2, w3, b3):
    """Full-precision reference matching the PyTorch module's f32 numerics."""
    y1 = jnp.maximum(jnp.dot(x, w1) + b1.reshape(1, -1), 0.0)
    y2 = jnp.maximum(jnp.dot(y1, w2) + b2.reshape(1, -1), 0.0)
    return jnp.dot(y2, w3) + b3.reshape(1, -1)


def _run_case(key, n_lights, batch):
    input_count = 18 * n_lights
    output_count = 2 ** n_lights
    kx, kp = jax.random.split(key)
    x = jax.random.normal(kx, (batch, input_count), jnp.float32)
    params = init_globalnet_params(kp, input_count, output_count)
    packed = pack_globalnet_params(*params)           # one-time packing (outside hot path)

    q = jax.block_until_ready(globalnet_forward(x, *packed, n_out=output_count))

    assert q.shape == (batch, output_count)
    # Tight check against a reference with identical bf16/f32 numerics.
    q_ref = reference_forward_bf16(x, *params)
    assert jnp.allclose(q, q_ref, atol=1e-2, rtol=1e-2), (
        f"bf16-ref mismatch: max abs err {jnp.max(jnp.abs(q - q_ref))}")
    # Loose check against the true f32 GlobalNet forward (bf16 weight/activation stream
    # introduces ~1e-2-level error; acceptable for Q-value argmax, verified here).
    q_f32 = reference_forward_f32(x, *params)
    assert jnp.allclose(q, q_f32, atol=1e-1, rtol=1e-1), (
        f"f32-ref mismatch: max abs err {jnp.max(jnp.abs(q - q_f32))}")


if __name__ == "__main__":
    key = jax.random.PRNGKey(0)
    k1, k2, k3 = jax.random.split(key, 3)

    # Small grid: 2x2 -> num_lights=4, input_count=72, output_count=16.
    _run_case(k1, n_lights=4, batch=8)

    # Larger, non-aligned batch: exercises adaptive batch tiling (3 tiles, 2 padded rows).
    _run_case(k2, n_lights=4, batch=1030)

    # Larger action space: num_lights=11 -> output_count=2048, single N tile (no recompute).
    _run_case(k3, n_lights=11, batch=16)

    # TODO(synk): get_loss / MSE / Adam optimizer / save-load are training-side utilities,
    # not part of the forward pass, and are not implemented here.
    print("KERNEL_OK")
</pallas_src>

<mosaic_0001>
module attributes {stable_mosaic.version = 11 : i64} {
  func.func @_globalnet_mlp_kernel(%arg0: i32, %arg1: i32, %arg2: memref<8x72xf32, #tpu.memory_space<vmem>>, %arg3: memref<72x64xbf16, #tpu.memory_space<vmem>>, %arg4: memref<1x64xf32, #tpu.memory_space<vmem>>, %arg5: memref<64x64xbf16, #tpu.memory_space<vmem>>, %arg6: memref<1x64xf32, #tpu.memory_space<vmem>>, %arg7: memref<64x128xbf16, #tpu.memory_space<vmem>>, %arg8: memref<1x128xf32, #tpu.memory_space<vmem>>, %arg9: memref<8x128xf32, #tpu.memory_space<vmem>>) attributes {dimension_semantics = [#tpu.dimension_semantics<parallel>, #tpu.dimension_semantics<arbitrary>], iteration_bounds = array<i64: 1, 1>, scalar_prefetch = 0 : i64, scratch_operands = 0 : i64, tpu.core_type = #tpu.core_type<tc>, window_params = [{transform_indices = @transform_0, window_bounds = array<i64: 8, 72>}, {pipeline_mode = #tpu.pipeline_mode<synchronous>, transform_indices = @transform_1, window_bounds = array<i64: 72, 64>}, {pipeline_mode = #tpu.pipeline_mode<synchronous>, transform_indices = @transform_2, window_bounds = array<i64: 1, 64>}, {pipeline_mode = #tpu.pipeline_mode<synchronous>, transform_indices = @transform_3, window_bounds = array<i64: 64, 64>}, {pipeline_mode = #tpu.pipeline_mode<synchronous>, transform_indices = @transform_4, window_bounds = array<i64: 1, 64>}, {transform_indices = @transform_5, window_bounds = array<i64: 64, 128>}, {transform_indices = @transform_6, window_bounds = array<i64: 1, 128>}, {transform_indices = @transform_7, window_bounds = array<i64: 8, 128>}]} {
    %c0 = arith.constant 0 : index
    %c0_0 = arith.constant 0 : index
    %0 = vector.load %arg2[%c0, %c0_0] : memref<8x72xf32, #tpu.memory_space<vmem>>, vector<8x72xf32>
    %1 = arith.truncf %0 : vector<8x72xf32> to vector<8x72xbf16>
    %c0_1 = arith.constant 0 : index
    %c0_2 = arith.constant 0 : index
    %2 = vector.load %arg3[%c0_1, %c0_2] : memref<72x64xbf16, #tpu.memory_space<vmem>>, vector<72x64xbf16>
    %cst = arith.constant dense<0.000000e+00> : vector<8x64xf32>
    %3 = tpu.matmul %1, %2, %cst {dimension_numbers = #tpu.dot_dimension_numbers<[1], [0], [0], [1], [0, 0, 1, 1], [], []>} : vector<8x72xbf16>, vector<72x64xbf16>, vector<8x64xf32> -> vector<8x64xf32>
    %c0_3 = arith.constant 0 : index
    %c0_4 = arith.constant 0 : index
    %4 = vector.load %arg4[%c0_3, %c0_4] : memref<1x64xf32, #tpu.memory_space<vmem>>, vector<1x64xf32>
    %5 = vector.broadcast %4 : vector<1x64xf32> to vector<8x64xf32>
    %6 = arith.addf %3, %5 : vector<8x64xf32>
    %cst_5 = arith.constant 0.000000e+00 : f32
    %7 = vector.broadcast %cst_5 : f32 to vector<8x64xf32>
    %8 = arith.maximumf %6, %7 : vector<8x64xf32>
    %9 = arith.truncf %8 : vector<8x64xf32> to vector<8x64xbf16>
    %c0_6 = arith.constant 0 : index
    %c0_7 = arith.constant 0 : index
    %10 = vector.load %arg5[%c0_6, %c0_7] : memref<64x64xbf16, #tpu.memory_space<vmem>>, vector<64x64xbf16>
    %cst_8 = arith.constant dense<0.000000e+00> : vector<8x64xf32>
    %11 = tpu.matmul %9, %10, %cst_8 {dimension_numbers = #tpu.dot_dimension_numbers<[1], [0], [0], [1], [0, 0, 1, 1], [], []>} : vector<8x64xbf16>, vector<64x64xbf16>, vector<8x64xf32> -> vector<8x64xf32>
    %c0_9 = arith.constant 0 : index
    %c0_10 = arith.constant 0 : index
    %12 = vector.load %arg6[%c0_9, %c0_10] : memref<1x64xf32, #tpu.memory_space<vmem>>, vector<1x64xf32>
    %13 = vector.broadcast %12 : vector<1x64xf32> to vector<8x64xf32>
    %14 = arith.addf %11, %13 : vector<8x64xf32>
    %cst_11 = arith.constant 0.000000e+00 : f32
    %15 = vector.broadcast %cst_11 : f32 to vector<8x64xf32>
    %16 = arith.maximumf %14, %15 : vector<8x64xf32>
    %17 = arith.truncf %16 : vector<8x64xf32> to vector<8x64xbf16>
    %c0_12 = arith.constant 0 : index
    %c0_13 = arith.constant 0 : index
    %18 = vector.load %arg7[%c0_12, %c0_13] : memref<64x128xbf16, #tpu.memory_space<vmem>>, vector<64x128xbf16>
    %cst_14 = arith.constant dense<0.000000e+00> : vector<8x128xf32>
    %19 = tpu.matmul %17, %18, %cst_14 {dimension_numbers = #tpu.dot_dimension_numbers<[1], [0], [0], [1], [0, 0, 1, 1], [], []>} : vector<8x64xbf16>, vector<64x128xbf16>, vector<8x128xf32> -> vector<8x128xf32>
    %c0_15 = arith.constant 0 : index
    %c0_16 = arith.constant 0 : index
    %20 = vector.load %arg8[%c0_15, %c0_16] : memref<1x128xf32, #tpu.memory_space<vmem>>, vector<1x128xf32>
    %21 = vector.broadcast %20 : vector<1x128xf32> to vector<8x128xf32>
    %22 = arith.addf %19, %21 : vector<8x128xf32>
    %c0_17 = arith.constant 0 : index
    %c0_18 = arith.constant 0 : index
    %23 = vector.load %arg9[%c0_17, %c0_18] : memref<8x128xf32, #tpu.memory_space<vmem>>, vector<8x128xf32>
    tpu.vector_store %arg9[%c0_17, %c0_18], %22 {strides = array<i32>} : memref<8x128xf32, #tpu.memory_space<vmem>>, vector<8x128xf32>,
    return
  }
  func.func @transform_0(%arg0: i32, %arg1: i32) -> (i32, i32) {
    %c0_i32 = arith.constant 0 : i32
    %c0_i32_0 = arith.constant 0 : i32
    return %arg0, %c0_i32 : i32, i32
  }
  func.func @transform_1(%arg0: i32, %arg1: i32) -> (i32, i32) {
    %c0_i32 = arith.constant 0 : i32
    %c0_i32_0 = arith.constant 0 : i32
    %c0_i32_1 = arith.constant 0 : i32
    return %c0_i32, %c0_i32_0 : i32, i32
  }
  func.func @transform_2(%arg0: i32, %arg1: i32) -> (i32, i32) {
    %c0_i32 = arith.constant 0 : i32
    %c0_i32_0 = arith.constant 0 : i32
    %c0_i32_1 = arith.constant 0 : i32
    return %c0_i32, %c0_i32_0 : i32, i32
  }
  func.func @transform_3(%arg0: i32, %arg1: i32) -> (i32, i32) {
    %c0_i32 = arith.constant 0 : i32
    %c0_i32_0 = arith.constant 0 : i32
    %c0_i32_1 = arith.constant 0 : i32
    return %c0_i32, %c0_i32_0 : i32, i32
  }
  func.func @transform_4(%arg0: i32, %arg1: i32) -> (i32, i32) {
    %c0_i32 = arith.constant 0 : i32
    %c0_i32_0 = arith.constant 0 : i32
    %c0_i32_1 = arith.constant 0 : i32
    return %c0_i32, %c0_i32_0 : i32, i32
  }
  func.func @transform_5(%arg0: i32, %arg1: i32) -> (i32, i32) {
    %c0_i32 = arith.constant 0 : i32
    %c0_i32_0 = arith.constant 0 : i32
    return %c0_i32, %arg1 : i32, i32
  }
  func.func @transform_6(%arg0: i32, %arg1: i32) -> (i32, i32) {
    %c0_i32 = arith.constant 0 : i32
    %c0_i32_0 = arith.constant 0 : i32
    return %c0_i32, %arg1 : i32, i32
  }
  func.func @transform_7(%arg0: i32, %arg1: i32) -> (i32, i32) {
    %c0_i32 = arith.constant 0 : i32
    return %arg0, %arg1 : i32, i32
  }
}

</mosaic_0001>

<llo_original>
// kernel: globalnet_forward.1
$region0: #{globalnet_forward.1}
  #allocation0 [shape = 'u32[]', space=smem, size = 0x4, offset = 0x4, fixed_abs, tag = 'smem constant byte address 0x4 - core index']
  #allocation1 [shape = 'u32[72,128]{1,0:T(1,128)}', space=vmem, size = 0x9000, scoped, tag = 'internal scratch']
  %s0 = inlined_call_operand.hbm [shape: f32[8,72], index: 0, kind: input, shape index: {}]
  %s1 = inlined_call_operand.vmem [shape: bf16[72,64], index: 1, kind: input, shape index: {}]
  %s2 = inlined_call_operand.vmem [shape: f32[1,64], index: 2, kind: input, shape index: {}]
  %s3 = inlined_call_operand.vmem [shape: bf16[64,64], index: 3, kind: input, shape index: {}]
  %s4 = inlined_call_operand.vmem [shape: f32[1,64], index: 4, kind: input, shape index: {}]
  %s5 = inlined_call_operand.vmem [shape: bf16[64,128], index: 5, kind: input, shape index: {}]
  %s6 = inlined_call_operand.vmem [shape: f32[1,128], index: 6, kind: input, shape index: {}]
  %s7 = inlined_call_operand.hbm [shape: f32[8,128], index: 7, kind: output, shape index: {}]
  %s8 = sld [smem:[#allocation0]]
  $region42: #{globalnet_forward.1} parent=0
    _
  %s10 = ssub.s32 1, %s8
  %s11 = scalar_select 0, %s10, %s8
  $region1: #{globalnet_forward.1} parent=0
    #allocation2 [shape = 'u8[4096]{0}', space=vmem, size = 0x1000, scoped, tag = 'input window, operand 0, single buffered']
    #allocation3 [shape = 's32[1]{0}', space=sflag, size = 0x4, scoped, tag = 'scoped memory for globalnet_forward.1']
    #allocation4 [shape = 's32[1]{0}', space=sflag, size = 0x4, scoped, tag = 'scoped memory for globalnet_forward.1']
    #allocation5 [shape = 'u8[4096]{0}', space=vmem, size = 0x1000, scoped, tag = 'output window, operand 0, single buffered']
    %12 = vsyncpa [#allocation3], 0
    %13 = vsyncpa [#allocation4], 0
    // Predicated region
    $region2: #{globalnet_forward.1} parent=1 // pred_check
      _
    $region3: #{globalnet_forward.1} parent=1 // pred_check_branch
      %15 = sbr.rel (0) target = $region5
    $region4: #{globalnet_forward.1} parent=1 // pred_region
      %17 = vsyncadd [#allocation3], 0
      %s19 = sshll.u32 %s0, 4
      %s20 = int_to_ptr.hbm [resolvable:$true] %s19
      %s21 = sshll.u32 [#allocation2], 4
      %s22 = int_to_ptr.vmem [resolvable:$true] %s21
      %24 = dma.hbm_to_vmem [thread:$0]  %s20, 128, %s22, [#allocation3]
    $region5: #{globalnet_forward.1} parent=1 // pred_fallthru
      _
    // Predicated region
    $region6: #{globalnet_forward.1} parent=1 // pred_check
      _
    $region7: #{globalnet_forward.1} parent=1 // pred_check_branch
      %26 = sbr.rel (0) target = $region9
    $region8: #{globalnet_forward.1} parent=1 // pred_region
      _
    $region9: #{globalnet_forward.1} parent=1 // pred_fallthru
      _
    // Predicated region
    $region10: #{globalnet_forward.1} parent=1 // pred_check
      _
    $region11: #{globalnet_forward.1} parent=1 // pred_check_branch
      %28 = sbr.rel (0) target = $region13
    $region12: #{globalnet_forward.1} parent=1 // pred_region
      _
    $region13: #{globalnet_forward.1} parent=1 // pred_fallthru
      _
    // Predicated region
    $region14: #{globalnet_forward.1} parent=1 // pred_check
      _
    $region15: #{globalnet_forward.1} parent=1 // pred_check_branch
      %30 = sbr.rel (0) target = $region17
    $region16: #{globalnet_forward.1} parent=1 // pred_region
      _
    $region17: #{globalnet_forward.1} parent=1 // pred_fallthru
      _
    // Predicated region
    $region18: #{globalnet_forward.1} parent=1 // pred_check
      _
    $region19: #{globalnet_forward.1} parent=1 // pred_check_branch
      %32 = sbr.rel (0) target = $region21
    $region20: #{globalnet_forward.1} parent=1 // pred_region
      _
    $region21: #{globalnet_forward.1} parent=1 // pred_fallthru
      _
    // Predicated region
    $region22: #{globalnet_forward.1} parent=1 // pred_check
      _
    $region23: #{globalnet_forward.1} parent=1 // pred_check_branch
      %34 = sbr.rel (0) target = $region25
    $region24: #{globalnet_forward.1} parent=1 // pred_region
      _
    $region25: #{globalnet_forward.1} parent=1 // pred_fallthru
      _
    // Predicated region
    $region26: #{globalnet_forward.1} parent=1 // pred_check
      _
    $region27: #{globalnet_forward.1} parent=1 // pred_check_branch
      %36 = sbr.rel (0) target = $region29
    $region28: #{globalnet_forward.1} parent=1 // pred_region
      _
    $region29: #{globalnet_forward.1} parent=1 // pred_fallthru
      _
    // Predicated region
    $region30: #{globalnet_forward.1} parent=1 // pred_check
      _
    $region31: #{globalnet_forward.1} parent=1 // pred_check_branch
      %38 = sbr.rel (0) target = $region33
    $region32: #{globalnet_forward.1} parent=1 // pred_region
      %40 = dma.done [#allocation3], 128
    $region33: #{globalnet_forward.1} parent=1 // pred_fallthru
      _
    %v42 = vld [vmem:[#allocation2] sm:$0xff]
    %v43 = vpack.c.bf16 %v42, %v42
    %v44 = vld [vmem:[%s1] sm:$0xf]
    %v45 = vld [vmem:[%s1 + $0x4] sm:$0xf]
    %v46 = vld [vmem:[%s1 + $0x8] sm:$0xf]
    %v47 = vld [vmem:[%s1 + $0xc] sm:$0xf]
    %v48 = vld [vmem:[%s1 + $0x10] sm:$0xf]
    %v49 = vld [vmem:[%s1 + $0x14] sm:$0xf]
    %v50 = vld [vmem:[%s1 + $0x18] sm:$0xf]
    %v51 = vld [vmem:[%s1 + $0x1c] sm:$0xf]
    %v52 = vld [vmem:[%s1 + $0x20] sm:$0xf]
    %v53 = vld [vmem:[%s2] sm:$0x1]
    %v55 = vperm.slane %v53, 0
    %v66 = vunpack.c.l.b16 %v44
    %v67 = vunpack.c.l.b16 %v45
    %v68 = vunpack.c.l.b16 %v46
    %v69 = vunpack.c.l.b16 %v47
    %v70 = vunpack.c.l.b16 %v48
    %v71 = vunpack.c.l.b16 %v49
    %v72 = vunpack.c.l.b16 %v50
    %v73 = vunpack.c.l.b16 %v51
    %v74 = vunpack.c.l.b16 %v52
    %v75 = vpack.c.b16 %v67, %v66
    %v76 = vpack.c.b16 %v69, %v68
    %v77 = vpack.c.b16 %v71, %v70
    %v78 = vpack.c.b16 %v73, %v72
    %v79 = vpack.c.b16 %v74, %v74
    %vm84 = vcmask 588800
    %v86 = vsel %vm84, %v43, 0
    %vm88 = vcmask 1043456
    %v90 = vsel %vm88, %v79, 0
    %92 = vmatpush.bf16.msra.mxu0 0
    %93 = vmatpush.bf16.msra.mxu0 0
    %94 = vmatpush.bf16.msra.mxu0 0
    %95 = vmatpush.bf16.msra.mxu0 %v90
    %96 = vmatpush.bf16.msra.mxu0 %v78
    %97 = vmatpush.bf16.msra.mxu0 %v77
    %98 = vmatpush.bf16.msra.mxu0 %v76
    %99 = vmatpush.bf16.msra.mxu0 %v75
    %100 = vmatmul.bf16.gmra.mxu0 %v86
    %v101 = vpop.f32.mrf.mxu0
    %v102 = vadd.f32 %v55, %v101
    %v103 = vpop.f32.mrf.mxu0
    %104 = vdwg.mxu0
    %v105 = vmax.f32 %v102, 0.0
    %v106 = vpack.c.bf16 %v105, %v105
    %v107 = vld [vmem:[%s3] sm:$0xf]
    %v108 = vld [vmem:[%s3 + $0x4] sm:$0xf]
    %v109 = vld [vmem:[%s3 + $0x8] sm:$0xf]
    %v110 = vld [vmem:[%s3 + $0xc] sm:$0xf]
    %v111 = vld [vmem:[%s3 + $0x10] sm:$0xf]
    %v112 = vld [vmem:[%s3 + $0x14] sm:$0xf]
    %v113 = vld [vmem:[%s3 + $0x18] sm:$0xf]
    %v114 = vld [vmem:[%s3 + $0x1c] sm:$0xf]
    %v115 = vld [vmem:[%s4] sm:$0x1]
    %v117 = vperm.slane %v115, 0
    %v127 = vunpack.c.l.b16 %v107
    %v128 = vunpack.c.l.b16 %v108
    %v129 = vunpack.c.l.b16 %v109
    %v130 = vunpack.c.l.b16 %v110
    %v131 = vunpack.c.l.b16 %v111
    %v132 = vunpack.c.l.b16 %v112
    %v133 = vunpack.c.l.b16 %v113
    %v134 = vunpack.c.l.b16 %v114
    %v135 = vpack.c.b16 %v128, %v127
    %v136 = vpack.c.b16 %v130, %v129
    %v137 = vpack.c.b16 %v132, %v131
    %v138 = vpack.c.b16 %v134, %v133
    %vm143 = vcmask 523264
    %v145 = vsel %vm143, %v106, 0
    %147 = vmatpush.bf16.msra.mxu0 0
    %148 = vmatpush.bf16.msra.mxu0 0
    %149 = vmatpush.bf16.msra.mxu0 0
    %150 = vmatpush.bf16.msra.mxu0 0
    %151 = vmatpush.bf16.msra.mxu0 %v138
    %152 = vmatpush.bf16.msra.mxu0 %v137
    %153 = vmatpush.bf16.msra.mxu0 %v136
    %154 = vmatpush.bf16.msra.mxu0 %v135
    %155 = vmatmul.bf16.gmra.mxu0 %v145
    %v156 = vpop.f32.mrf.mxu0
    %v157 = vadd.f32 %v117, %v156
    %v158 = vpop.f32.mrf.mxu0
    %159 = vdwg.mxu0
    %v160 = vmax.f32 %v157, 0.0
    %v161 = vpack.c.bf16 %v160, %v160
    %v162 = vld [vmem:[%s5] sm:$0xf]
    %v163 = vld [vmem:[%s5 + $0x4] sm:$0xf]
    %v164 = vld [vmem:[%s5 + $0x8] sm:$0xf]
    %v165 = vld [vmem:[%s5 + $0xc] sm:$0xf]
    %v166 = vld [vmem:[%s5 + $0x10] sm:$0xf]
    %v167 = vld [vmem:[%s5 + $0x14] sm:$0xf]
    %v168 = vld [vmem:[%s5 + $0x18] sm:$0xf]
    %v169 = vld [vmem:[%s5 + $0x1c] sm:$0xf]
    %v170 = vld [vmem:[%s6] sm:$0x1]
    %v172 = vperm.slane %v170, 0
    %v182 = vunpack.c.l.b16 %v162
    %v183 = vunpack.c.l.b16 %v163
    %v184 = vunpack.c.l.b16 %v164
    %v185 = vunpack.c.l.b16 %v165
    %v186 = vunpack.c.l.b16 %v166
    %v187 = vunpack.c.l.b16 %v167
    %v188 = vunpack.c.l.b16 %v168
    %v189 = vunpack.c.l.b16 %v169
    %v190 = vpack.c.b16 %v183, %v182
    %v191 = vpack.c.b16 %v185, %v184
    %v192 = vpack.c.b16 %v187, %v186
    %v193 = vpack.c.b16 %v189, %v188
    %v199 = vsel %vm143, %v161, 0
    %201 = vmatpush.bf16.msra.mxu0 0
    %202 = vmatpush.bf16.msra.mxu0 0
    %203 = vmatpush.bf16.msra.mxu0 0
    %204 = vmatpush.bf16.msra.mxu0 0
    %205 = vmatpush.bf16.msra.mxu0 %v193
    %206 = vmatpush.bf16.msra.mxu0 %v192
    %207 = vmatpush.bf16.msra.mxu0 %v191
    %208 = vmatpush.bf16.msra.mxu0 %v190
    %209 = vmatmul.bf16.gmra.mxu0 %v199
    %v210 = vpop.f32.mrf.mxu0
    %v211 = vadd.f32 %v172, %v210
    %v212 = vpop.f32.mrf.mxu0
    %213 = vdwg.mxu0
    %214 = vst [vmem:[#allocation5] sm:$0xff] %v211
    // Predicated region
    $region34: #{globalnet_forward.1} parent=1 // pred_check
      _
    $region35: #{globalnet_forward.1} parent=1 // pred_check_branch
      %216 = sbr.rel (0) target = $region37
    $region36: #{globalnet_forward.1} parent=1 // pred_region
      %218 = vsyncadd [#allocation4], 0
      %s220 = sshll.u32 [#allocation5], 4
      %s221 = int_to_ptr.vmem [resolvable:$true] %s220
      %s222 = sshll.u32 %s7, 4
      %s223 = int_to_ptr.hbm [resolvable:$true] %s222
      %225 = dma.vmem_to_hbm [thread:$0]  %s221, 128, %s223, [#allocation4]
    $region37: #{globalnet_forward.1} parent=1 // pred_fallthru
      _
    // Predicated region
    $region38: #{globalnet_forward.1} parent=1 // pred_check
      _
    $region39: #{globalnet_forward.1} parent=1 // pred_check_branch
      %227 = sbr.rel (0) target = $region41
    $region40: #{globalnet_forward.1} parent=1 // pred_region
      %229 = dma.done [#allocation4], 128
    $region41: #{globalnet_forward.1} parent=1 // pred_fallthru
      _
    %230 = vsyncpa [#allocation3], 1
    %231 = vsyncpa [#allocation4], 1

</llo_original>
